<compile_context>
chip_gen: v6e
topology: v6e:2x2x1
jax: 0.10.0
libtpu: 0.0.40
codegen_flags: <defaults>
</compile_context>

<pallas_src>
import jax
import jax.numpy as jnp
from jax.experimental import pallas as pl
from jax.experimental.pallas import tpu as pltpu


def _round_up(x: int, m: int) -> int:
    return (x + m - 1) // m * m


# ----------------------------------------------------------------------------
# Kernels
# ----------------------------------------------------------------------------
def _fc_kernel_single(x_ref, w_ref, b_ref, o_ref):
    """Whole K in one tile: no accumulator, no init/finalize branches."""
    o_ref[...] = (jnp.dot(x_ref[...], w_ref[...],
                          preferred_element_type=jnp.float32)
                  + b_ref[...]).astype(o_ref.dtype)


def _fc_kernel_ktiled_f32out(x_ref, w_ref, b_ref, o_ref):
    """K tiled, f32 output: the output tile (resident across k) is the accumulator."""
    k = pl.program_id(2)

    @pl.when(k == 0)
    def _():
        o_ref[...] = jnp.zeros_like(o_ref)

    o_ref[...] += jnp.dot(x_ref[...], w_ref[...],
                          preferred_element_type=jnp.float32)

    @pl.when(k == pl.num_programs(2) - 1)
    def _():
        o_ref[...] += b_ref[...]


def _fc_kernel_ktiled_scratch(x_ref, w_ref, b_ref, o_ref, acc_ref):
    """K tiled, low-precision output: f32 VMEM scratch accumulator."""
    k = pl.program_id(2)

    @pl.when(k == 0)
    def _():
        acc_ref[...] = jnp.zeros_like(acc_ref)

    acc_ref[...] += jnp.dot(x_ref[...], w_ref[...],
                            preferred_element_type=jnp.float32)

    @pl.when(k == pl.num_programs(2) - 1)
    def _():
        o_ref[...] = (acc_ref[...] + b_ref[...]).astype(o_ref.dtype)


# ----------------------------------------------------------------------------
# Wrapper
# ----------------------------------------------------------------------------
def make_fc(weight, bias, *, mxu_dtype=None, tm=512, tn=512, tk=1024,
            vmem_limit_bytes=48 * 1024 * 1024):
    """Prepare FC parameters once and return an `apply(x)` callable.

    weight: (C_out, C_in)  -- PyTorch nn.Linear layout.
    bias:   (C_out,)
    mxu_dtype: optional compute dtype for the matmul operands (e.g. jnp.bfloat16);
               accumulation stays f32 and the output keeps x.dtype.
    """
    c_out, c_in = weight.shape
    compute_dtype = jnp.dtype(mxu_dtype) if mxu_dtype is not None else jnp.dtype(weight.dtype)
    sub = 16 if compute_dtype.itemsize == 2 else 8   # sublane packing

    tn = min(tn, _round_up(c_out, 128))
    tk = min(tk, _round_up(c_in, 128))
    co_p = _round_up(c_out, tn)
    ci_p = _round_up(c_in, tk)

    # One-time parameter prep: cast, pad, transpose (C_out,C_in)->(ci_p,co_p).
    w = weight.astype(compute_dtype)
    if (co_p, ci_p) != (c_out, c_in):
        w = jnp.pad(w, ((0, co_p - c_out), (0, ci_p - c_in)))
    w_t = jnp.asarray(jnp.transpose(w))                      # (ci_p, co_p)
    b_p = bias.astype(jnp.float32)
    if co_p != c_out:
        b_p = jnp.pad(b_p, (0, co_p - c_out))
    b_p = b_p.reshape(1, co_p)

    in_itemsize = compute_dtype.itemsize

    def apply(x):
        n = x.shape[0]
        assert x.shape[1] == c_in, "input feature dim mismatch"
        out_dtype = x.dtype
        out_itemsize = jnp.dtype(out_dtype).itemsize

        x_c = x.astype(compute_dtype) if x.dtype != compute_dtype else x

        tm_ = min(tm, _round_up(n, sub))
        tn_ = tn
        tk_ = tk
        n_p = _round_up(n, tm_)

        # Megacore (v7x): make sure the two parallel axes have combined extent >= 2
        # when the tile alignment rules allow a split.
        if n_p // tm_ == 1 and co_p // tn_ == 1:
            if tn_ % 256 == 0:
                tn_ //= 2
            elif tm_ % (2 * sub) == 0:
                tm_ //= 2

        # Collapse the K grid axis when the whole contraction fits the VMEM budget.
        budget = int(0.75 * vmem_limit_bytes)
        full_k_footprint = (2 * ci_p * (tm_ + tn_) * in_itemsize   # x + w tiles, 2-buffered
                            + 2 * tm_ * tn_ * out_itemsize         # output tile, 2-buffered
                            + tm_ * tn_ * 4)                       # possible acc scratch
        if full_k_footprint <= budget:
            tk_ = ci_p

        grid_m = n_p // tm_
        grid_n = co_p // tn_
        grid_k = ci_p // tk_

        x_p = x_c
        if n_p != n or ci_p != c_in:
            x_p = jnp.pad(x_c, ((0, n_p - n), (0, ci_p - c_in)))

        # Cost estimate accounts for tile re-reads across the grid.
        cost = pl.CostEstimate(
            flops=2 * n_p * ci_p * co_p,
            transcendentals=0,
            bytes_accessed=(x_p.size * in_itemsize * grid_n
                            + w_t.size * in_itemsize * grid_m
                            + b_p.size * 4 * grid_m
                            + n_p * co_p * out_itemsize))

        if grid_k == 1:
            kernel = _fc_kernel_single
            grid = (grid_m, grid_n)
            in_specs = [
                pl.BlockSpec((tm_, tk_), lambda i, j: (i, 0)),   # x
                pl.BlockSpec((tk_, tn_), lambda i, j: (0, j)),   # W^T (pre-transposed)
                pl.BlockSpec((1, tn_), lambda i, j: (0, j)),     # bias
            ]
            out_specs = pl.BlockSpec((tm_, tn_), lambda i, j: (i, j))
            scratch = []
            sem = ("parallel", "parallel")
        else:
            grid = (grid_m, grid_n, grid_k)
            in_specs = [
                pl.BlockSpec((tm_, tk_), lambda i, j, k: (i, k)),  # x
                pl.BlockSpec((tk_, tn_), lambda i, j, k: (k, j)),  # W^T
                pl.BlockSpec((1, tn_), lambda i, j, k: (0, j)),    # bias
            ]
            out_specs = pl.BlockSpec((tm_, tn_), lambda i, j, k: (i, j))
            sem = ("parallel", "parallel", "arbitrary")
            if out_dtype == jnp.float32:
                kernel = _fc_kernel_ktiled_f32out
                scratch = []
            else:
                kernel = _fc_kernel_ktiled_scratch
                scratch = [pltpu.VMEM((tm_, tn_), jnp.float32)]

        y_p = pl.pallas_call(
            kernel,
            out_shape=jax.ShapeDtypeStruct((n_p, co_p), out_dtype),
            grid_spec=pltpu.PrefetchScalarGridSpec(
                num_scalar_prefetch=0,
                grid=grid,
                in_specs=in_specs,
                out_specs=out_specs,
                scratch_shapes=scratch),
            compiler_params=pltpu.CompilerParams(
                dimension_semantics=sem,
                vmem_limit_bytes=vmem_limit_bytes),
            cost_estimate=cost,
        )(x_p, w_t, b_p)

        if n_p != n or co_p != c_out:
            y_p = y_p[:n, :c_out]
        return y_p

    return apply


def fc_forward(x, weight, bias, **kwargs):
    """Convenience one-shot wrapper (parameter prep not amortized)."""
    return make_fc(weight, bias, **kwargs)(x)


if __name__ == "__main__":
    key = jax.random.PRNGKey(0)
    k_x, k_w, k_b = jax.random.split(key, 3)

    # Small shapes consistent with the module: batch=8, in_channels=32, out_channels=64.
    n, c_in, c_out = 8, 32, 64

    x = jax.random.normal(k_x, (n, c_in), dtype=jnp.float32)

    # Deterministic parameter init mirroring the module's __init__:
    #   weight ~ Normal(0, 0.01); bias ~ U(-1/sqrt(in), 1/sqrt(in)) (nn.Linear default).
    weight = 0.01 * jax.random.normal(k_w, (c_out, c_in), dtype=jnp.float32)
    bound = 1.0 / jnp.sqrt(jnp.float32(c_in))
    bias = jax.random.uniform(k_b, (c_out,), dtype=jnp.float32,
                              minval=-bound, maxval=bound)

    y_ref = x @ weight.T + bias

    # f32 path (exact check).
    fc_f32 = make_fc(weight, bias)
    y = jax.block_until_ready(fc_f32(x))
    assert y.shape == (n, c_out)
    assert jnp.allclose(y, y_ref, atol=1e-5, rtol=1e-5)

    # bf16-MXU path (f32 accumulation, looser tolerance).
    fc_bf16 = make_fc(weight, bias, mxu_dtype=jnp.bfloat16)
    y_bf16 = jax.block_until_ready(fc_bf16(x))
    assert y_bf16.shape == (n, c_out)
    assert y_bf16.dtype == jnp.float32
    assert jnp.allclose(y_bf16, y_ref, atol=1e-2, rtol=1e-2)

    print("KERNEL_OK")
</pallas_src>

<mosaic_0001>
module attributes {stable_mosaic.version = 11 : i64} {
  func.func @_fc_kernel_single(%arg0: i32, %arg1: i32, %arg2: memref<8x128xf32, #tpu.memory_space<vmem>>, %arg3: memref<128x128xf32, #tpu.memory_space<vmem>>, %arg4: memref<1x128xf32, #tpu.memory_space<vmem>>, %arg5: memref<8x128xf32, #tpu.memory_space<vmem>>) attributes {dimension_semantics = [#tpu.dimension_semantics<parallel>, #tpu.dimension_semantics<parallel>], iteration_bounds = array<i64: 1, 1>, scalar_prefetch = 0 : i64, scratch_operands = 0 : i64, tpu.core_type = #tpu.core_type<tc>, window_params = [{transform_indices = @transform_0, window_bounds = array<i64: 8, 128>}, {transform_indices = @transform_1, window_bounds = array<i64: 128, 128>}, {transform_indices = @transform_2, window_bounds = array<i64: 1, 128>}, {transform_indices = @transform_3, window_bounds = array<i64: 8, 128>}]} {
    %c0 = arith.constant 0 : index
    %c0_0 = arith.constant 0 : index
    %0 = vector.load %arg2[%c0, %c0_0] : memref<8x128xf32, #tpu.memory_space<vmem>>, vector<8x128xf32>
    %c0_1 = arith.constant 0 : index
    %c0_2 = arith.constant 0 : index
    %1 = vector.load %arg3[%c0_1, %c0_2] : memref<128x128xf32, #tpu.memory_space<vmem>>, vector<128x128xf32>
    %cst = arith.constant dense<0.000000e+00> : vector<8x128xf32>
    %2 = tpu.matmul %0, %1, %cst {dimension_numbers = #tpu.dot_dimension_numbers<[1], [0], [0], [1], [0, 0, 1, 1], [], []>} : vector<8x128xf32>, vector<128x128xf32>, vector<8x128xf32> -> vector<8x128xf32>
    %c0_3 = arith.constant 0 : index
    %c0_4 = arith.constant 0 : index
    %3 = vector.load %arg4[%c0_3, %c0_4] : memref<1x128xf32, #tpu.memory_space<vmem>>, vector<1x128xf32>
    %4 = vector.broadcast %3 : vector<1x128xf32> to vector<8x128xf32>
    %5 = arith.addf %2, %4 : vector<8x128xf32>
    %c0_5 = arith.constant 0 : index
    %c0_6 = arith.constant 0 : index
    %6 = vector.load %arg5[%c0_5, %c0_6] : memref<8x128xf32, #tpu.memory_space<vmem>>, vector<8x128xf32>
    tpu.vector_store %arg5[%c0_5, %c0_6], %5 {strides = array<i32>} : memref<8x128xf32, #tpu.memory_space<vmem>>, vector<8x128xf32>,
    return
  }
  func.func @transform_0(%arg0: i32, %arg1: i32) -> (i32, i32) {
    %c0_i32 = arith.constant 0 : i32
    %c0_i32_0 = arith.constant 0 : i32
    return %arg0, %c0_i32 : i32, i32
  }
  func.func @transform_1(%arg0: i32, %arg1: i32) -> (i32, i32) {
    %c0_i32 = arith.constant 0 : i32
    %c0_i32_0 = arith.constant 0 : i32
    return %c0_i32, %arg1 : i32, i32
  }
  func.func @transform_2(%arg0: i32, %arg1: i32) -> (i32, i32) {
    %c0_i32 = arith.constant 0 : i32
    %c0_i32_0 = arith.constant 0 : i32
    return %c0_i32, %arg1 : i32, i32
  }
  func.func @transform_3(%arg0: i32, %arg1: i32) -> (i32, i32) {
    %c0_i32 = arith.constant 0 : i32
    return %arg0, %arg1 : i32, i32
  }
}

</mosaic_0001>

<llo_original>
// kernel: tpu_custom_call.1
$region0: #{tpu_custom_call.1}
  #allocation0 [shape = 'u32[]', space=smem, size = 0x4, offset = 0x4, fixed_abs, tag = 'smem constant byte address 0x4 - core index']
  #allocation1 [shape = 'u32[144,128]{1,0:T(1,128)}', space=vmem, size = 0x12000, scoped, tag = 'internal scratch']
  %s0 = inlined_call_operand.hbm [shape: f32[8,128], index: 0, kind: input, shape index: {}]
  %s1 = inlined_call_operand.hbm [shape: f32[128,128], index: 1, kind: input, shape index: {}]
  %s2 = inlined_call_operand.vmem [shape: f32[1,128], index: 2, kind: input, shape index: {}]
  %s3 = inlined_call_operand.hbm [shape: f32[8,128], index: 3, kind: output, shape index: {}]
  %s4 = sld [smem:[#allocation0]]
  $region30: #{tpu_custom_call.1} parent=0
    _
  %s6 = ssub.s32 1, %s4
  %s7 = scalar_select 0, %s6, %s4
  $region1: #{tpu_custom_call.1} parent=0
    #allocation2 [shape = 'u8[4096]{0}', space=vmem, size = 0x1000, scoped, tag = 'input window, operand 0, single buffered']
    #allocation3 [shape = 's32[1]{0}', space=sflag, size = 0x4, scoped, tag = 'scoped memory for tpu_custom_call.1']
    #allocation4 [shape = 's32[1]{0}', space=sflag, size = 0x4, scoped, tag = 'scoped memory for tpu_custom_call.1']
    #allocation5 [shape = 'u8[65536]{0}', space=vmem, size = 0x10000, scoped, tag = 'input window, operand 1, single buffered']
    #allocation6 [shape = 's32[1]{0}', space=sflag, size = 0x4, scoped, tag = 'scoped memory for tpu_custom_call.1']
    #allocation7 [shape = 'u8[4096]{0}', space=vmem, size = 0x1000, scoped, tag = 'output window, operand 0, single buffered']
    %8 = vsyncpa [#allocation3], 0
    %9 = vsyncpa [#allocation6], 0
    %10 = vsyncpa [#allocation4], 0
    // Predicated region
    $region2: #{tpu_custom_call.1} parent=1 // pred_check
      _
    $region3: #{tpu_custom_call.1} parent=1 // pred_check_branch
      %12 = sbr.rel (0) target = $region5
    $region4: #{tpu_custom_call.1} parent=1 // pred_region
      %s14 = ssub.s32 128, 128
      %15 = vsyncadd [#allocation3], %s14
      %s17 = sshll.u32 [#allocation2], 4
      %s18 = int_to_ptr.vmem [resolvable:$true] %s17
      %20 = dma.hbm_to_vmem [thread:$0]  %s0, 128, %s18, [#allocation3]
    $region5: #{tpu_custom_call.1} parent=1 // pred_fallthru
      _
    // Predicated region
    $region6: #{tpu_custom_call.1} parent=1 // pred_check
      _
    $region7: #{tpu_custom_call.1} parent=1 // pred_check_branch
      %22 = sbr.rel (0) target = $region9
    $region8: #{tpu_custom_call.1} parent=1 // pred_region
      %s24 = ssub.s32 2048, 2048
      %25 = vsyncadd [#allocation6], %s24
      %s26 = sshll.u32 [#allocation5], 4
      %s27 = int_to_ptr.vmem [resolvable:$true] %s26
      %32 = dma.hbm_to_vmem [thread:$0]  %s1, 2048, %s27, [#allocation6], 128, 128, 8
    $region9: #{tpu_custom_call.1} parent=1 // pred_fallthru
      _
    // Predicated region
    $region10: #{tpu_custom_call.1} parent=1 // pred_check
      _
    $region11: #{tpu_custom_call.1} parent=1 // pred_check_branch
      %34 = sbr.rel (0) target = $region13
    $region12: #{tpu_custom_call.1} parent=1 // pred_region
      _
    $region13: #{tpu_custom_call.1} parent=1 // pred_fallthru
      _
    // Predicated region
    $region14: #{tpu_custom_call.1} parent=1 // pred_check
      _
    $region15: #{tpu_custom_call.1} parent=1 // pred_check_branch
      %36 = sbr.rel (0) target = $region17
    $region16: #{tpu_custom_call.1} parent=1 // pred_region
      %37 = dma.done [#allocation3], 128
    $region17: #{tpu_custom_call.1} parent=1 // pred_fallthru
      _
    // Predicated region
    $region18: #{tpu_custom_call.1} parent=1 // pred_check
      _
    $region19: #{tpu_custom_call.1} parent=1 // pred_check_branch
      %39 = sbr.rel (0) target = $region21
    $region20: #{tpu_custom_call.1} parent=1 // pred_region
      %40 = dma.done [#allocation6], 2048
    $region21: #{tpu_custom_call.1} parent=1 // pred_fallthru
      _
    %v41 = vld [vmem:[#allocation2] sm:$0xff]
    %v42 = vld [vmem:[#allocation5] sm:$0xff]
    %v43 = vld [vmem:[#allocation5 + $0x8] sm:$0xff]
    %v44 = vld [vmem:[#allocation5 + $0x10] sm:$0xff]
    %v45 = vld [vmem:[#allocation5 + $0x18] sm:$0xff]
    %v46 = vld [vmem:[#allocation5 + $0x20] sm:$0xff]
    %v47 = vld [vmem:[#allocation5 + $0x28] sm:$0xff]
    %v48 = vld [vmem:[#allocation5 + $0x30] sm:$0xff]
    %v49 = vld [vmem:[#allocation5 + $0x38] sm:$0xff]
    %v50 = vld [vmem:[#allocation5 + $0x40] sm:$0xff]
    %v51 = vld [vmem:[#allocation5 + $0x48] sm:$0xff]
    %v52 = vld [vmem:[#allocation5 + $0x50] sm:$0xff]
    %v53 = vld [vmem:[#allocation5 + $0x58] sm:$0xff]
    %v54 = vld [vmem:[#allocation5 + $0x60] sm:$0xff]
    %v55 = vld [vmem:[#allocation5 + $0x68] sm:$0xff]
    %v56 = vld [vmem:[#allocation5 + $0x70] sm:$0xff]
    %v57 = vld [vmem:[#allocation5 + $0x78] sm:$0xff]
    %v58 = vld [vmem:[%s2] sm:$0x1]
    %v60 = vlaneseq
    %v61 = vshrl.u32 %v60, 7
    %v62 = vsub.s32 0, %v61
    %v63 = vrot.slane %v58, %v62
    %65 = vmatprep.subr.mxu0 0.0
    %66 = vmatpush1.msra.mxu0 %v57
    %67 = vmatprep.subr.mxu0 0.0
    %68 = vmatpush1.msra.mxu0 %v56
    %69 = vmatprep.subr.mxu0 0.0
    %70 = vmatpush1.msra.mxu0 %v55
    %71 = vmatprep.subr.mxu0 0.0
    %72 = vmatpush1.msra.mxu0 %v54
    %73 = vmatprep.subr.mxu0 0.0
    %74 = vmatpush1.msra.mxu0 %v53
    %75 = vmatprep.subr.mxu0 0.0
    %76 = vmatpush1.msra.mxu0 %v52
    %77 = vmatprep.subr.mxu0 0.0
    %78 = vmatpush1.msra.mxu0 %v51
    %79 = vmatprep.subr.mxu0 0.0
    %80 = vmatpush1.msra.mxu0 %v50
    %81 = vmatprep.subr.mxu0 0.0
    %82 = vmatpush1.msra.mxu0 %v49
    %83 = vmatprep.subr.mxu0 0.0
    %84 = vmatpush1.msra.mxu0 %v48
    %85 = vmatprep.subr.mxu0 0.0
    %86 = vmatpush1.msra.mxu0 %v47
    %87 = vmatprep.subr.mxu0 0.0
    %88 = vmatpush1.msra.mxu0 %v46
    %89 = vmatprep.subr.mxu0 0.0
    %90 = vmatpush1.msra.mxu0 %v45
    %91 = vmatprep.subr.mxu0 0.0
    %92 = vmatpush1.msra.mxu0 %v44
    %93 = vmatprep.subr.mxu0 0.0
    %94 = vmatpush1.msra.mxu0 %v43
    %95 = vmatprep.subr.mxu0 0.0
    %96 = vmatpush1.msra.mxu0 %v42
    %97 = vmatprep.subr.mxu0 0.0
    %98 = vmatpush2.msra.mxu0 0.0
    %99 = vmatprep.subr.mxu0 0.0
    %100 = vmatpush2.msra.mxu0 0.0
    %101 = vmatprep.subr.mxu0 0.0
    %102 = vmatpush2.msra.mxu0 0.0
    %103 = vmatprep.subr.mxu0 0.0
    %104 = vmatpush2.msra.mxu0 0.0
    %105 = vmatprep.subr.mxu0 0.0
    %106 = vmatpush2.msra.mxu0 0.0
    %107 = vmatprep.subr.mxu0 0.0
    %108 = vmatpush2.msra.mxu0 0.0
    %109 = vmatprep.subr.mxu0 0.0
    %110 = vmatpush2.msra.mxu0 0.0
    %111 = vmatprep.subr.mxu0 0.0
    %112 = vmatpush2.msra.mxu0 0.0
    %113 = vmatprep.subr.mxu0 0.0
    %114 = vmatpush2.msra.mxu0 0.0
    %115 = vmatprep.subr.mxu0 0.0
    %116 = vmatpush2.msra.mxu0 0.0
    %117 = vmatprep.subr.mxu0 0.0
    %118 = vmatpush2.msra.mxu0 0.0
    %119 = vmatprep.subr.mxu0 0.0
    %120 = vmatpush2.msra.mxu0 0.0
    %121 = vmatprep.subr.mxu0 0.0
    %122 = vmatpush2.msra.mxu0 0.0
    %123 = vmatprep.subr.mxu0 0.0
    %124 = vmatpush2.msra.mxu0 0.0
    %125 = vmatprep.subr.mxu0 0.0
    %126 = vmatpush2.msra.mxu0 0.0
    %127 = vmatprep.subr.mxu0 0.0
    %128 = vmatpush2.msra.mxu0 0.0
    %129 = vmatprep.mubr.f32.mxu0 0.0
    %130 = vmatmul.mubr.f32.gmra.mxu0 %v41
    %v131 = vpop.f32.mrf.mxu0
    %v132 = vadd.f32 %v63, %v131
    %v133 = vpop.f32.mrf.mxu0
    %134 = vdwg.mxu0
    %135 = vst [vmem:[#allocation7] sm:$0xff] %v132
    // Predicated region
    $region22: #{tpu_custom_call.1} parent=1 // pred_check
      _
    $region23: #{tpu_custom_call.1} parent=1 // pred_check_branch
      %137 = sbr.rel (0) target = $region25
    $region24: #{tpu_custom_call.1} parent=1 // pred_region
      %s139 = ssub.s32 128, 128
      %140 = vsyncadd [#allocation4], %s139
      %s142 = sshll.u32 [#allocation7], 4
      %s143 = int_to_ptr.vmem [resolvable:$true] %s142
      %145 = dma.vmem_to_hbm [thread:$0]  %s143, 128, %s3, [#allocation4]
    $region25: #{tpu_custom_call.1} parent=1 // pred_fallthru
      _
    // Predicated region
    $region26: #{tpu_custom_call.1} parent=1 // pred_check
      _
    $region27: #{tpu_custom_call.1} parent=1 // pred_check_branch
      %147 = sbr.rel (0) target = $region29
    $region28: #{tpu_custom_call.1} parent=1 // pred_region
      %148 = dma.done [#allocation4], 128
    $region29: #{tpu_custom_call.1} parent=1 // pred_fallthru
      _
    %149 = vsyncpa [#allocation3], 1
    %150 = vsyncpa [#allocation6], 1
    %151 = vsyncpa [#allocation4], 1

</llo_original>
